<compile_context>
chip_gen: v5e
topology: v5e:2x2
jax: 0.10.0
libtpu: 0.0.40
codegen_flags: <defaults>
</compile_context>

<pallas_src>
import functools
import math

import jax
import jax.numpy as jnp
from jax.experimental import pallas as pl
from jax.experimental.pallas import tpu as pltpu

EPS = 1e-5          # nn.BatchNorm1d default eps
LANE = 128
SUBLANE = 8


def _partial_stats_kernel(x_ref, acc_ref, *, tm, d_fold, rows, nblocks, steps,
                          rows_acc):
    """Phase 1: per-part partial sums of x and x^2 over row tiles.

    Grid (num_parts, steps): axis 0 "parallel" (one part per TensorCore on
    v7x), axis 1 "arbitrary" with acc_ref resident (constant block index).
      acc_ref[0:rows_acc, :]             -> per-sublane partial sum(x)
      acc_ref[rows_acc:2*rows_acc, :]    -> per-sublane partial sum(x^2)
    Ragged-tail rows and clamped/duplicated overflow steps are zeroed via the
    row mask, so the statistics are exact without any wrapper-side padding.
    """
    i = pl.program_id(1)

    @pl.when(i == 0)
    def _init():
        acc_ref[...] = jnp.zeros_like(acc_ref)

    lin = pl.program_id(0) * steps + i            # unclamped linear block id
    blk = jnp.minimum(lin, nblocks - 1)           # matches input index_map
    row0 = blk * tm
    step_ok = lin < nblocks                       # overflow steps contribute 0

    x = x_ref[...].astype(jnp.float32)
    row_ids = jax.lax.broadcasted_iota(jnp.int32, (tm, 1), 0)
    valid = jnp.logical_and(step_ok, row_ids < (rows - row0))
    xm = jnp.where(valid, x, 0.0)
    sq = xm * xm

    if rows_acc == SUBLANE:
        # Full-vreg accumulation: collapse the tile to one (8, d_fold) slab per
        # quantity (VPU adds only); cross-sublane reduce deferred to wrapper.
        ps = jnp.sum(xm.reshape(tm // SUBLANE, SUBLANE, d_fold), axis=0)
        pq = jnp.sum(sq.reshape(tm // SUBLANE, SUBLANE, d_fold), axis=0)
    else:
        # Single small tile (tm == rows, rows not a multiple of 8).
        ps = jnp.sum(xm, axis=0, keepdims=True)
        pq = jnp.sum(sq, axis=0, keepdims=True)

    acc_ref[0:rows_acc, :] += ps
    acc_ref[rows_acc:2 * rows_acc, :] += pq


def _normalize_kernel(x_ref, scale_ref, shift_ref, o_ref):
    """Phase 2: lane-dense elementwise o = x * scale + shift (2 VPU ops/elem)."""
    o_ref[...] = (x_ref[...].astype(jnp.float32) * scale_ref[...]
                  + shift_ref[...]).astype(o_ref.dtype)


def normalization_forward(x, gamma, beta, *, row_tile=2048):
    """Batch-norm forward matching the PyTorch module (training mode).

    x:     (batch, graph_size, embed_dim)
    gamma: (embed_dim,)   beta: (embed_dim,)
    """
    b, s, d = x.shape
    n = b * s

    # Lane-dense folding: pack `fold` consecutive rows into the lane axis so
    # d_fold is a multiple of 128 (unmasked vst on the output path).
    if d % LANE == 0:
        fold = 1
    else:
        fold = LANE // math.gcd(d, LANE)          # lcm(d, 128) // d
        if n % fold != 0 or d * fold > 4096:
            fold = 1                               # correct fallback (may mask)
    d_fold = d * fold
    rows = n // fold
    x_fold = x.reshape(rows, d_fold)               # element-order preserving

    # Row tiling: ~1 MiB input blocks, multiple of 8 rows unless single block.
    bytes_per_row = d_fold * 4
    tm_cap = max(SUBLANE,
                 min(row_tile, ((1 << 20) // bytes_per_row) // SUBLANE * SUBLANE))
    tm = rows if rows <= tm_cap else tm_cap

    nblocks = pl.cdiv(rows, tm)
    num_parts = 2 if nblocks >= 2 else 1           # v7x: one part per TC
    steps = pl.cdiv(nblocks, num_parts)
    rows_acc = SUBLANE if tm % SUBLANE == 0 else 1

    # ---- Phase 1: partial sum / sum(x^2) --------------------------------
    acc = pl.pallas_call(
        functools.partial(_partial_stats_kernel, tm=tm, d_fold=d_fold,
                          rows=rows, nblocks=nblocks, steps=steps,
                          rows_acc=rows_acc),
        out_shape=jax.ShapeDtypeStruct((num_parts, 2 * rows_acc, d_fold),
                                       jnp.float32),
        grid_spec=pl.GridSpec(
            grid=(num_parts, steps),
            in_specs=[pl.BlockSpec(
                (tm, d_fold),
                lambda p, i: (jnp.minimum(p * steps + i, nblocks - 1), 0))],
            out_specs=pl.BlockSpec((None, 2 * rows_acc, d_fold),
                                   lambda p, i: (p, 0, 0)),
        ),
        compiler_params=pltpu.CompilerParams(
            dimension_semantics=("parallel", "arbitrary")),
        cost_estimate=pl.CostEstimate(flops=3 * n * d, transcendentals=0,
                                      bytes_accessed=n * d * 4),
    )(x_fold)

    # ---- Finalize (tiny, done in plain JAX on a (2*8, d_fold) array) ----
    acc = jnp.sum(acc, axis=0)                        # combine TC parts
    s_lane = jnp.sum(acc[:rows_acc], axis=0)          # (d_fold,)
    q_lane = jnp.sum(acc[rows_acc:], axis=0)          # (d_fold,)
    s_feat = jnp.sum(s_lane.reshape(fold, d), axis=0)  # (d,)
    q_feat = jnp.sum(q_lane.reshape(fold, d), axis=0)  # (d,)
    inv_n = 1.0 / n
    mean = s_feat * inv_n
    # Single-pass variance (E[x^2]-mean^2): fine for f32 activations.
    var = jnp.maximum(q_feat * inv_n - mean * mean, 0.0)
    scale = gamma.astype(jnp.float32) * jax.lax.rsqrt(var + EPS)
    shift = beta.astype(jnp.float32) - mean * scale
    scale_f = jnp.tile(scale, fold).reshape(1, d_fold)
    shift_f = jnp.tile(shift, fold).reshape(1, d_fold)

    # ---- Phase 2: normalize (parallel over row tiles) --------------------
    out_fold = pl.pallas_call(
        _normalize_kernel,
        out_shape=jax.ShapeDtypeStruct((rows, d_fold), x.dtype),
        grid_spec=pl.GridSpec(
            grid=(nblocks,),
            in_specs=[
                pl.BlockSpec((tm, d_fold), lambda i: (i, 0)),
                pl.BlockSpec((1, d_fold), lambda i: (0, 0)),
                pl.BlockSpec((1, d_fold), lambda i: (0, 0)),
            ],
            out_specs=pl.BlockSpec((tm, d_fold), lambda i: (i, 0)),
        ),
        compiler_params=pltpu.CompilerParams(
            dimension_semantics=("parallel",)),
        cost_estimate=pl.CostEstimate(flops=2 * n * d, transcendentals=0,
                                      bytes_accessed=2 * n * d * 4),
    )(x_fold, scale_f, shift_f)

    return out_fold.reshape(b, s, d)


def init_parameters(embed_dim, key):
    """Mirror Normalization.init_parameters: uniform(-stdv, stdv),
    stdv = 1/sqrt(param.size(-1)) = 1/sqrt(embed_dim)."""
    stdv = 1.0 / math.sqrt(embed_dim)
    k_gamma, k_beta = jax.random.split(key)
    gamma = jax.random.uniform(k_gamma, (embed_dim,), jnp.float32, -stdv, stdv)
    beta = jax.random.uniform(k_beta, (embed_dim,), jnp.float32, -stdv, stdv)
    return gamma, beta


def _reference(x, gamma, beta):
    d = x.shape[-1]
    x2d = x.reshape(-1, d)
    mean = jnp.mean(x2d, axis=0, keepdims=True)
    var = jnp.mean((x2d - mean) ** 2, axis=0, keepdims=True)
    return ((x2d - mean) / jnp.sqrt(var + EPS) * gamma + beta).reshape(x.shape)


def _check(x, gamma, beta, **kw):
    out = jax.block_until_ready(normalization_forward(x, gamma, beta, **kw))
    ref = _reference(x, gamma, beta)
    err = float(jnp.max(jnp.abs(out - ref)))
    assert jnp.allclose(out, ref, atol=1e-4, rtol=1e-4), err


if __name__ == "__main__":
    key = jax.random.PRNGKey(0)

    # 1) Shapes matching the module's use in the graph encoder:
    #    (batch=2, graph_size=8, embed_dim=32). Single-tile, fold=4 path.
    k1, k2, key = jax.random.split(key, 3)
    x = jax.random.normal(k1, (2, 8, 32), dtype=jnp.float32)
    gamma, beta = init_parameters(32, k2)
    _check(x, gamma, beta)

    # 2) Larger case exercising the multi-part / multi-step reduction and the
    #    ragged last tile (rows=2400, tm=512 -> 5 blocks over 2 parts).
    k1, k2, key = jax.random.split(key, 3)
    x = jax.random.normal(k1, (8, 1200, 32), dtype=jnp.float32)
    gamma, beta = init_parameters(32, k2)
    _check(x, gamma, beta, row_tile=512)

    # 3) embed_dim=96 (does not divide 128): lcm-based fold -> d_fold=384.
    k1, k2, key = jax.random.split(key, 3)
    x = jax.random.normal(k1, (2, 50, 96), dtype=jnp.float32)
    gamma, beta = init_parameters(96, k2)
    _check(x, gamma, beta)

    # TODO(synk): 'instance' normalization branch (nn.InstanceNorm1d) is not
    # exercised by the default constructor; only the 'batch' path is implemented.
    # TODO(synk): running_mean/running_var state updates of BatchNorm1d are not
    # modeled (forward output only).
    print("KERNEL_OK")
</pallas_src>

<mosaic_0001>
module attributes {stable_mosaic.version = 11 : i64} {
  func.func @_partial_stats_kernel(%arg0: i32, %arg1: i32, %arg2: memref<4x128xf32, #tpu.memory_space<vmem>>, %arg3: memref<1x2x128xf32, #tpu.memory_space<vmem>>) attributes {dimension_semantics = [#tpu.dimension_semantics<parallel>, #tpu.dimension_semantics<arbitrary>], iteration_bounds = array<i64: 1, 1>, scalar_prefetch = 0 : i64, scratch_operands = 0 : i64, tpu.core_type = #tpu.core_type<tc>, window_params = [{transform_indices = @transform_0, window_bounds = array<i64: 4, 128>}, {transform_indices = @transform_1, window_bounds = array<i64: 1, 2, 128>}]} {
    %c0_i32 = arith.constant 0 : i32
    %0 = arith.cmpi eq, %arg1, %c0_i32 : i32
    %1 = arith.extui %0 : i1 to i32
    %c0_i32_0 = arith.constant 0 : i32
    %2 = arith.cmpi ne, %1, %c0_i32_0 : i32
    scf.if %2 {
      %cst_18 = arith.constant 0.000000e+00 : f32
      %36 = vector.broadcast %cst_18 : f32 to vector<2x128xf32>
      %c0_19 = arith.constant 0 : index
      %c0_20 = arith.constant 0 : index
      %c0_21 = arith.constant 0 : index
      %37 = vector.load %arg3[%c0_19, %c0_20, %c0_21] : memref<1x2x128xf32, #tpu.memory_space<vmem>>, vector<1x2x128xf32>
      %38 = vector.shape_cast %37 : vector<1x2x128xf32> to vector<2x128xf32>
      %39 = vector.shape_cast %36 : vector<2x128xf32> to vector<1x2x128xf32>
      tpu.vector_store %arg3[%c0_19, %c0_20, %c0_21], %39 {strides = array<i32>} : memref<1x2x128xf32, #tpu.memory_space<vmem>>, vector<1x2x128xf32>,
    } else {
    }
    %c1_i32 = arith.constant 1 : i32
    %3 = arith.muli %arg0, %c1_i32 : i32
    %4 = arith.addi %3, %arg1 : i32
    %c0_i32_1 = arith.constant 0 : i32
    %5 = arith.minsi %4, %c0_i32_1 : i32
    %c4_i32 = arith.constant 4 : i32
    %6 = arith.muli %5, %c4_i32 : i32
    %c1_i32_2 = arith.constant 1 : i32
    %7 = arith.cmpi slt, %4, %c1_i32_2 : i32
    %c0 = arith.constant 0 : index
    %c0_3 = arith.constant 0 : index
    %8 = vector.load %arg2[%c0, %c0_3] : memref<4x128xf32, #tpu.memory_space<vmem>>, vector<4x128xf32>
    %9 = tpu.iota {dimensions = array<i32: 0>} : vector<4x1xi32>
    %c4_i32_4 = arith.constant 4 : i32
    %10 = arith.subi %c4_i32_4, %6 : i32
    %11 = vector.broadcast %10 : i32 to vector<4x1xi32>
    %12 = arith.cmpi slt, %9, %11 : vector<4x1xi32>
    %13 = vector.broadcast %7 : i1 to vector<4x1xi1>
    %14 = arith.andi %13, %12 : vector<4x1xi1>
    %cst = arith.constant 0.000000e+00 : f32
    %15 = vector.shape_cast %14 : vector<4x1xi1> to vector<4x1xi1>
    %16 = vector.broadcast %15 : vector<4x1xi1> to vector<4x128xi1>
    %17 = vector.broadcast %cst : f32 to vector<4x128xf32>
    %18 = arith.select %16, %8, %17 : vector<4x128xi1>, vector<4x128xf32>
    %19 = arith.mulf %18, %18 : vector<4x128xf32>
    %cst_5 = arith.constant dense<0.000000e+00> : vector<128xf32>
    %20 = vector.multi_reduction <add>, %18, %cst_5 [0] : vector<4x128xf32> to vector<128xf32>
    %21 = vector.shape_cast %20 : vector<128xf32> to vector<1x128xf32>
    %cst_6 = arith.constant dense<0.000000e+00> : vector<128xf32>
    %22 = vector.multi_reduction <add>, %19, %cst_6 [0] : vector<4x128xf32> to vector<128xf32>
    %23 = vector.shape_cast %22 : vector<128xf32> to vector<1x128xf32>
    %c0_7 = arith.constant 0 : index
    %c0_8 = arith.constant 0 : index
    %c0_9 = arith.constant 0 : index
    %24 = vector.load %arg3[%c0_7, %c0_8, %c0_9] : memref<1x2x128xf32, #tpu.memory_space<vmem>>, vector<1x1x128xf32>
    %25 = vector.shape_cast %24 : vector<1x1x128xf32> to vector<1x128xf32>
    %26 = arith.addf %25, %21 : vector<1x128xf32>
    %c0_10 = arith.constant 0 : index
    %c0_11 = arith.constant 0 : index
    %c0_12 = arith.constant 0 : index
    %27 = vector.load %arg3[%c0_10, %c0_11, %c0_12] : memref<1x2x128xf32, #tpu.memory_space<vmem>>, vector<1x1x128xf32>
    %28 = vector.shape_cast %27 : vector<1x1x128xf32> to vector<1x128xf32>
    %29 = vector.shape_cast %26 : vector<1x128xf32> to vector<1x1x128xf32>
    tpu.vector_store %arg3[%c0_10, %c0_11, %c0_12], %29 {strides = array<i32>} : memref<1x2x128xf32, #tpu.memory_space<vmem>>, vector<1x1x128xf32>,
    %c0_13 = arith.constant 0 : index
    %c1 = arith.constant 1 : index
    %c0_14 = arith.constant 0 : index
    %30 = vector.load %arg3[%c0_13, %c1, %c0_14] : memref<1x2x128xf32, #tpu.memory_space<vmem>>, vector<1x1x128xf32>
    %31 = vector.shape_cast %30 : vector<1x1x128xf32> to vector<1x128xf32>
    %32 = arith.addf %31, %23 : vector<1x128xf32>
    %c0_15 = arith.constant 0 : index
    %c1_16 = arith.constant 1 : index
    %c0_17 = arith.constant 0 : index
    %33 = vector.load %arg3[%c0_15, %c1_16, %c0_17] : memref<1x2x128xf32, #tpu.memory_space<vmem>>, vector<1x1x128xf32>
    %34 = vector.shape_cast %33 : vector<1x1x128xf32> to vector<1x128xf32>
    %35 = vector.shape_cast %32 : vector<1x128xf32> to vector<1x1x128xf32>
    tpu.vector_store %arg3[%c0_15, %c1_16, %c0_17], %35 {strides = array<i32>} : memref<1x2x128xf32, #tpu.memory_space<vmem>>, vector<1x1x128xf32>,
    return
  }
  func.func @transform_0(%arg0: i32, %arg1: i32) -> (i32, i32) {
    %c1_i32 = arith.constant 1 : i32
    %0 = arith.muli %arg0, %c1_i32 : i32
    %1 = arith.addi %0, %arg1 : i32
    %c0_i32 = arith.constant 0 : i32
    %2 = arith.minsi %1, %c0_i32 : i32
    %c0_i32_0 = arith.constant 0 : i32
    %c0_i32_1 = arith.constant 0 : i32
    return %2, %c0_i32_0 : i32, i32
  }
  func.func @transform_1(%arg0: i32, %arg1: i32) -> (i32, i32, i32) {
    %c0_i32 = arith.constant 0 : i32
    %c0_i32_0 = arith.constant 0 : i32
    %c0_i32_1 = arith.constant 0 : i32
    return %arg0, %c0_i32, %c0_i32_0 : i32, i32, i32
  }
}

</mosaic_0001>

<llo_original>
// kernel: tpu_custom_call.1
$region0: #{tpu_custom_call.1}
  #allocation0 [shape = 'u32[]', space=smem, size = 0x4, offset = 0x4, fixed_abs, tag = 'smem constant byte address 0x4 - core index']
  #allocation1 [shape = 'u32[72,128]{1,0:T(1,128)}', space=vmem, size = 0x9000, scoped, tag = 'internal scratch']
  %s0 = inlined_call_operand.hbm [shape: f32[4,128], index: 0, kind: input, shape index: {}]
  %s1 = inlined_call_operand.hbm [shape: f32[1,2,128], index: 1, kind: output, shape index: {}]
  %s2 = sld [smem:[#allocation0]]
  $region22: #{tpu_custom_call.1} parent=0
    _
  %s4 = ssub.s32 1, %s2
  %s5 = scalar_select 0, %s4, %s2
  $region1: #{tpu_custom_call.1} parent=0
    #allocation2 [shape = 'u8[2048]{0}', space=vmem, size = 0x800, scoped, tag = 'input window, operand 0, single buffered']
    #allocation3 [shape = 's32[1]{0}', space=sflag, size = 0x4, scoped, tag = 'scoped memory for tpu_custom_call.1']
    #allocation4 [shape = 's32[1]{0}', space=sflag, size = 0x4, scoped, tag = 'scoped memory for tpu_custom_call.1']
    #allocation5 [shape = 'u8[1024]{0}', space=vmem, size = 0x400, scoped, tag = 'output window, operand 0, single buffered']
    %6 = vsyncpa [#allocation3], 0
    %7 = vsyncpa [#allocation4], 0
    // Predicated region
    $region2: #{tpu_custom_call.1} parent=1 // pred_check
      _
    $region3: #{tpu_custom_call.1} parent=1 // pred_check_branch
      %9 = sbr.rel (0) target = $region5
    $region4: #{tpu_custom_call.1} parent=1 // pred_region
      %s10 = sadd.s32 0, 0
      %p11 = scmp.lt.s32.totalorder %s10, 0
      %s12 = scalar_select %p11, %s10, 0
      %14 = vsyncadd [#allocation3], 0
      %s15 = smul.addr %s12, 4
      %s16 = scalar_lea.hbm %s0, %s15
      %s18 = sshll.u32 %s16, 4
      %s19 = int_to_ptr.hbm [resolvable:$true] %s18
      %s20 = sshll.u32 [#allocation2], 4
      %s21 = int_to_ptr.vmem [resolvable:$true] %s20
      %23 = dma.hbm_to_vmem [thread:$0]  %s19, 64, %s21, [#allocation3]
    $region5: #{tpu_custom_call.1} parent=1 // pred_fallthru
      _
    // Predicated region
    $region6: #{tpu_custom_call.1} parent=1 // pred_check
      _
    $region7: #{tpu_custom_call.1} parent=1 // pred_check_branch
      %25 = sbr.rel (0) target = $region9
    $region8: #{tpu_custom_call.1} parent=1 // pred_region
      %27 = dma.done [#allocation3], 64
    $region9: #{tpu_custom_call.1} parent=1 // pred_fallthru
      _
    %s28 = sadd.s32 0, 0
    %p29 = scmp.lt.s32.totalorder %s28, 0
    %s30 = scalar_select %p29, %s28, 0
    %p31 = scmp.eq.s32.totalorder 0, 0
    // Predicated region
    $region10: #{tpu_custom_call.1} parent=1 // pred_check
      %p32 = pneg %p31
    $region11: #{tpu_custom_call.1} parent=1 // pred_check_branch
      %34 = sbr.rel (%p32) target = $region13
    $region12: #{tpu_custom_call.1} parent=1 // pred_region
      %35 = vst [vmem:[#allocation5] sm:$0x3] 0.0
    $region13: #{tpu_custom_call.1} parent=1 // pred_fallthru
      _
    %s36 = sadd.s32 0, 0
    %p37 = scmp.lt.s32.totalorder %s36, 0
    %s38 = scalar_select %p37, %s36, 0
    %s39 = smul.u32 %s38, 4
    %p40 = scmp.lt.s32.totalorder %s36, 1
    %v41 = vld [vmem:[#allocation2] sm:$0xf]
    %v42 = vlaneseq
    %v43 = vshrl.u32 %v42, 7
    %s44 = ssub.s32 4, %s39
    %v45 = vstv %s44
    %vm46 = vcmp.lt.s32.totalorder %v43, %v45
    %s47 = scalar_select %p40, 1, 0
    %v48 = vstv %s47
    %vm49 = vcmp.eq.s32.totalorder %v48, 1
    %vm50 = vmand %vm49, %vm46
    %v51 = vsel %vm50, 1, 0
    %vm52 = vcmp.eq.s32.totalorder %v51, 1
    %v53 = vsel %vm52, %v41, 0.0
    %v54 = vmul.f32 %v53, %v53
    %vm55 = vcmask 1043456
    %v56 = vsel %vm55, %v53, 0.0
    %v57 = vrot.slane %v56, 4
    %v58 = vadd.f32 %v56, %v57
    %v59 = vrot.slane %v58, 2
    %v60 = vadd.f32 %v58, %v59
    %v61 = vrot.slane %v60, 1
    %v62 = vadd.f32 %v60, %v61
    %v63 = vsel %vm55, %v54, 0.0
    %v64 = vrot.slane %v63, 4
    %v65 = vadd.f32 %v63, %v64
    %v66 = vrot.slane %v65, 2
    %v67 = vadd.f32 %v65, %v66
    %v68 = vrot.slane %v67, 1
    %v69 = vadd.f32 %v67, %v68
    %v70 = vld [vmem:[#allocation5] sm:$0x1]
    %v71 = vadd.f32 %v70, %v62
    %72 = vst [vmem:[#allocation5] sm:$0x1] %v71
    %v73 = vld [vmem:[#allocation5 + $0x1] sm:$0x1]
    %v74 = vadd.f32 %v73, %v69
    %75 = vst [vmem:[#allocation5 + $0x1] sm:$0x1] %v74
    // Predicated region
    $region14: #{tpu_custom_call.1} parent=1 // pred_check
      _
    $region15: #{tpu_custom_call.1} parent=1 // pred_check_branch
      %77 = sbr.rel (0) target = $region17
    $region16: #{tpu_custom_call.1} parent=1 // pred_region
      %79 = vsyncadd [#allocation4], 0
      %s81 = sshll.u32 [#allocation5], 4
      %s82 = int_to_ptr.vmem [resolvable:$true] %s81
      %s83 = sshll.u32 %s1, 4
      %s84 = int_to_ptr.hbm [resolvable:$true] %s83
      %86 = dma.vmem_to_hbm [thread:$0]  %s82, 32, %s84, [#allocation4]
    $region17: #{tpu_custom_call.1} parent=1 // pred_fallthru
      _
    // Predicated region
    $region18: #{tpu_custom_call.1} parent=1 // pred_check
      _
    $region19: #{tpu_custom_call.1} parent=1 // pred_check_branch
      %88 = sbr.rel (0) target = $region21
    $region20: #{tpu_custom_call.1} parent=1 // pred_region
      %90 = dma.done [#allocation4], 32
    $region21: #{tpu_custom_call.1} parent=1 // pred_fallthru
      _
    %91 = vsyncpa [#allocation3], 1
    %92 = vsyncpa [#allocation4], 1

</llo_original>
